<compile_context>
chip_gen: v5e
topology: v5e:2x2
jax: 0.10.0
libtpu: 0.0.40
codegen_flags: <defaults>
</compile_context>

<pallas_src>
import jax
import jax.numpy as jnp
from jax.experimental import pallas as pl
from jax.experimental.pallas import tpu as pltpu


def _dirichlet_relu_kernel(dirichlet_ref, value_ref, out_ref):
    d = dirichlet_ref[...]
    v = value_ref[...]
    # Overwrite with dirichlet value wherever dirichlet is NOT NaN.
    ans = jnp.where(jnp.isnan(d), v, d)
    # activation = "relu"  (scalar 0.0 -> no broadcast zeros tile materialized)
    out_ref[...] = jnp.maximum(ans, 0.0)


def dirichlet_forward(
    dirichlet: jax.Array,
    value: jax.Array,
    *,
    lane_cols: int = 512,      # lane-dense last dim (multiple of 128)
    block_rows: int = 1024,    # rows per tile (multiple of 8)
) -> jax.Array:
    """Apply Dirichlet overwrite + relu via a Pallas TPU kernel.

    dirichlet, value: same shape / dtype (float), NaN in `dirichlet` means
    "keep `value` there"; elsewhere the dirichlet value overwrites.
    """
    assert dirichlet.shape == value.shape
    assert dirichlet.dtype == value.dtype

    orig_shape = dirichlet.shape
    n_elems = dirichlet.size
    itemsize = jnp.dtype(dirichlet.dtype).itemsize

    # ---- reshape to a lane-dense 2-D slab (pure layout plumbing) ----------
    d_flat = dirichlet.reshape(-1)
    v_flat = value.reshape(-1)
    pad = (-n_elems) % lane_cols
    if pad:
        # Pad with zeros: isnan(0)=False -> ans=0 -> relu(0)=0; sliced off below.
        d_flat = jnp.pad(d_flat, (0, pad))
        v_flat = jnp.pad(v_flat, (0, pad))
    n_rows = d_flat.size // lane_cols
    d2 = d_flat.reshape(n_rows, lane_cols)
    v2 = v_flat.reshape(n_rows, lane_cols)

    # Shrink the row tile for small inputs (full-dim block is always legal).
    blk_rows = min(block_rows, n_rows)

    grid = (pl.cdiv(n_rows, blk_rows),)
    spec = pl.BlockSpec((blk_rows, lane_cols), lambda i: (i, 0))

    out2 = pl.pallas_call(
        _dirichlet_relu_kernel,
        out_shape=jax.ShapeDtypeStruct((n_rows, lane_cols), dirichlet.dtype),
        grid=grid,
        in_specs=[spec, spec],
        out_specs=spec,
        compiler_params=pltpu.CompilerParams(
            dimension_semantics=("parallel",),
            vmem_limit_bytes=32 << 20,  # raises v5e's 16 MiB default; safe everywhere
        ),
        cost_estimate=pl.CostEstimate(
            flops=3 * n_elems,           # isnan + select + max per element
            transcendentals=0,
            bytes_accessed=3 * n_elems * itemsize,
        ),
    )(d2, v2)

    out_flat = out2.reshape(-1)
    if pad:
        out_flat = out_flat[:n_elems]
    return out_flat.reshape(orig_shape)


if __name__ == "__main__":
    key = jax.random.PRNGKey(0)
    k1, k2, k3 = jax.random.split(key, 3)

    n_nodes, n_features = 256, 32  # small shapes consistent with the module

    # "value" tensor coming from the predecessor module.
    value = jax.random.normal(k1, (n_nodes, n_features), dtype=jnp.float32)

    # "dirichlet" field: NaN where the value should pass through,
    # prescribed boundary values elsewhere.
    bc_values = jax.random.normal(k2, (n_nodes, n_features), dtype=jnp.float32)
    nan_mask = jax.random.uniform(k3, (n_nodes, n_features)) < 0.7
    dirichlet = jnp.where(nan_mask, jnp.nan, bc_values).astype(jnp.float32)

    out = dirichlet_forward(dirichlet, value)
    out = jax.block_until_ready(out)

    # Pure-JAX reference check.
    ref = jax.nn.relu(jnp.where(jnp.isnan(dirichlet), value, dirichlet))
    assert out.shape == ref.shape and out.dtype == ref.dtype
    assert jnp.allclose(out, ref), "mismatch vs reference"
    assert not jnp.any(jnp.isnan(out)), "NaNs leaked through"

    # Also exercise the padding / partial-block path with an awkward shape.
    m, f = 101, 7
    v_small = jax.random.normal(k1, (m, f), dtype=jnp.float32)
    bc_small = jax.random.normal(k2, (m, f), dtype=jnp.float32)
    msk_small = jax.random.uniform(k3, (m, f)) < 0.5
    d_small = jnp.where(msk_small, jnp.nan, bc_small).astype(jnp.float32)
    out_small = jax.block_until_ready(dirichlet_forward(d_small, v_small))
    ref_small = jax.nn.relu(jnp.where(jnp.isnan(d_small), v_small, d_small))
    assert jnp.allclose(out_small, ref_small), "mismatch vs reference (padded path)"

    print("KERNEL_OK")
</pallas_src>

<mosaic_0001>
module attributes {stable_mosaic.version = 11 : i64} {
  func.func @_dirichlet_relu_kernel(%arg0: i32, %arg1: memref<16x512xf32, #tpu.memory_space<vmem>>, %arg2: memref<16x512xf32, #tpu.memory_space<vmem>>, %arg3: memref<16x512xf32, #tpu.memory_space<vmem>>) attributes {dimension_semantics = [#tpu.dimension_semantics<parallel>], iteration_bounds = array<i64: 1>, scalar_prefetch = 0 : i64, scratch_operands = 0 : i64, tpu.core_type = #tpu.core_type<tc>, window_params = [{transform_indices = @transform_0, window_bounds = array<i64: 16, 512>}, {transform_indices = @transform_1, window_bounds = array<i64: 16, 512>}, {transform_indices = @transform_2, window_bounds = array<i64: 16, 512>}]} {
    %c0 = arith.constant 0 : index
    %c0_0 = arith.constant 0 : index
    %0 = vector.load %arg1[%c0, %c0_0] : memref<16x512xf32, #tpu.memory_space<vmem>>, vector<16x512xf32>
    %c0_1 = arith.constant 0 : index
    %c0_2 = arith.constant 0 : index
    %1 = vector.load %arg2[%c0_1, %c0_2] : memref<16x512xf32, #tpu.memory_space<vmem>>, vector<16x512xf32>
    %2 = arith.cmpf one, %0, %0 : vector<16x512xf32>
    %3 = arith.select %2, %1, %0 : vector<16x512xi1>, vector<16x512xf32>
    %cst = arith.constant 0.000000e+00 : f32
    %4 = vector.broadcast %cst : f32 to vector<16x512xf32>
    %5 = arith.maximumf %3, %4 : vector<16x512xf32>
    %c0_3 = arith.constant 0 : index
    %c0_4 = arith.constant 0 : index
    %6 = vector.load %arg3[%c0_3, %c0_4] : memref<16x512xf32, #tpu.memory_space<vmem>>, vector<16x512xf32>
    tpu.vector_store %arg3[%c0_3, %c0_4], %5 {strides = array<i32>} : memref<16x512xf32, #tpu.memory_space<vmem>>, vector<16x512xf32>,
    return
  }
  func.func @transform_0(%arg0: i32) -> (i32, i32) {
    %c0_i32 = arith.constant 0 : i32
    %c0_i32_0 = arith.constant 0 : i32
    return %arg0, %c0_i32 : i32, i32
  }
  func.func @transform_1(%arg0: i32) -> (i32, i32) {
    %c0_i32 = arith.constant 0 : i32
    %c0_i32_0 = arith.constant 0 : i32
    return %arg0, %c0_i32 : i32, i32
  }
  func.func @transform_2(%arg0: i32) -> (i32, i32) {
    %c0_i32 = arith.constant 0 : i32
    %c0_i32_0 = arith.constant 0 : i32
    return %arg0, %c0_i32 : i32, i32
  }
}

</mosaic_0001>

<llo_original>
// kernel: tpu_custom_call.1
$region0: #{tpu_custom_call.1}
  #allocation0 [shape = 'u32[]', space=smem, size = 0x4, offset = 0x4, fixed_abs, tag = 'smem constant byte address 0x4 - core index']
  #allocation1 [shape = 'u32[72,128]{1,0:T(1,128)}', space=vmem, size = 0x9000, scoped, tag = 'internal scratch']
  %s0 = inlined_call_operand.hbm [shape: f32[16,512], index: 0, kind: input, shape index: {}]
  %s1 = inlined_call_operand.hbm [shape: f32[16,512], index: 1, kind: input, shape index: {}]
  %s2 = inlined_call_operand.hbm [shape: f32[16,512], index: 2, kind: output, shape index: {}]
  %s3 = sld [smem:[#allocation0]]
  $region26: #{tpu_custom_call.1} parent=0
    _
  %s5 = ssub.s32 1, %s3
  %s6 = scalar_select 0, %s5, %s3
  $region1: #{tpu_custom_call.1} parent=0
    #allocation2 [shape = 'u8[32768]{0}', space=vmem, size = 0x8000, scoped, tag = 'input window, operand 0, single buffered']
    #allocation3 [shape = 's32[1]{0}', space=sflag, size = 0x4, scoped, tag = 'scoped memory for tpu_custom_call.1']
    #allocation4 [shape = 's32[1]{0}', space=sflag, size = 0x4, scoped, tag = 'scoped memory for tpu_custom_call.1']
    #allocation5 [shape = 'u8[32768]{0}', space=vmem, size = 0x8000, scoped, tag = 'input window, operand 1, single buffered']
    #allocation6 [shape = 's32[1]{0}', space=sflag, size = 0x4, scoped, tag = 'scoped memory for tpu_custom_call.1']
    #allocation7 [shape = 'u8[32768]{0}', space=vmem, size = 0x8000, scoped, tag = 'output window, operand 0, single buffered']
    %7 = vsyncpa [#allocation3], 0
    %8 = vsyncpa [#allocation6], 0
    %9 = vsyncpa [#allocation4], 0
    // Predicated region
    $region2: #{tpu_custom_call.1} parent=1 // pred_check
      _
    $region3: #{tpu_custom_call.1} parent=1 // pred_check_branch
      %11 = sbr.rel (0) target = $region5
    $region4: #{tpu_custom_call.1} parent=1 // pred_region
      %13 = vsyncadd [#allocation3], 0
      %s14 = sshll.u32 %s0, 4
      %s15 = int_to_ptr.hbm [resolvable:$true] %s14
      %s16 = sshll.u32 [#allocation2], 4
      %s17 = int_to_ptr.vmem [resolvable:$true] %s16
      %22 = dma.hbm_to_vmem [thread:$0]  %s15, 1024, %s17, [#allocation3], 512, 512, 32
    $region5: #{tpu_custom_call.1} parent=1 // pred_fallthru
      _
    // Predicated region
    $region6: #{tpu_custom_call.1} parent=1 // pred_check
      _
    $region7: #{tpu_custom_call.1} parent=1 // pred_check_branch
      %24 = sbr.rel (0) target = $region9
    $region8: #{tpu_custom_call.1} parent=1 // pred_region
      %26 = vsyncadd [#allocation6], 0
      %s27 = sshll.u32 %s1, 4
      %s28 = int_to_ptr.hbm [resolvable:$true] %s27
      %s29 = sshll.u32 [#allocation5], 4
      %s30 = int_to_ptr.vmem [resolvable:$true] %s29
      %35 = dma.hbm_to_vmem [thread:$0]  %s28, 1024, %s30, [#allocation6], 512, 512, 32
    $region9: #{tpu_custom_call.1} parent=1 // pred_fallthru
      _
    // Predicated region
    $region10: #{tpu_custom_call.1} parent=1 // pred_check
      _
    $region11: #{tpu_custom_call.1} parent=1 // pred_check_branch
      %37 = sbr.rel (0) target = $region13
    $region12: #{tpu_custom_call.1} parent=1 // pred_region
      %39 = dma.done [#allocation3], 1024
    $region13: #{tpu_custom_call.1} parent=1 // pred_fallthru
      _
    // Predicated region
    $region14: #{tpu_custom_call.1} parent=1 // pred_check
      _
    $region15: #{tpu_custom_call.1} parent=1 // pred_check_branch
      %41 = sbr.rel (0) target = $region17
    $region16: #{tpu_custom_call.1} parent=1 // pred_region
      %43 = dma.done [#allocation6], 1024
    $region17: #{tpu_custom_call.1} parent=1 // pred_fallthru
      _
    %v44 = vld [vmem:[#allocation2] sm:$0xff]
    %v45 = vld [vmem:[#allocation2 + $0x8] sm:$0xff]
    %v46 = vld [vmem:[#allocation2 + $0x10] sm:$0xff]
    %v47 = vld [vmem:[#allocation2 + $0x18] sm:$0xff]
    %v48 = vld [vmem:[#allocation2 + $0x20] sm:$0xff]
    %v49 = vld [vmem:[#allocation2 + $0x28] sm:$0xff]
    %v50 = vld [vmem:[#allocation2 + $0x30] sm:$0xff]
    %v51 = vld [vmem:[#allocation2 + $0x38] sm:$0xff]
    %v52 = vld [vmem:[#allocation5] sm:$0xff]
    %v53 = vld [vmem:[#allocation5 + $0x8] sm:$0xff]
    %v54 = vld [vmem:[#allocation5 + $0x10] sm:$0xff]
    %v55 = vld [vmem:[#allocation5 + $0x18] sm:$0xff]
    %v56 = vld [vmem:[#allocation5 + $0x20] sm:$0xff]
    %v57 = vld [vmem:[#allocation5 + $0x28] sm:$0xff]
    %v58 = vld [vmem:[#allocation5 + $0x30] sm:$0xff]
    %v59 = vld [vmem:[#allocation5 + $0x38] sm:$0xff]
    %vm60 = vcmp.ne.f32.partialorder %v44, %v44
    %vm61 = vcmp.ne.f32.partialorder %v45, %v45
    %vm62 = vcmp.ne.f32.partialorder %v46, %v46
    %vm63 = vcmp.ne.f32.partialorder %v47, %v47
    %vm64 = vcmp.ne.f32.partialorder %v48, %v48
    %vm65 = vcmp.ne.f32.partialorder %v49, %v49
    %vm66 = vcmp.ne.f32.partialorder %v50, %v50
    %vm67 = vcmp.ne.f32.partialorder %v51, %v51
    %v68 = vsel %vm60, %v52, %v44
    %v69 = vsel %vm61, %v53, %v45
    %v70 = vsel %vm62, %v54, %v46
    %v71 = vsel %vm63, %v55, %v47
    %v72 = vsel %vm64, %v56, %v48
    %v73 = vsel %vm65, %v57, %v49
    %v74 = vsel %vm66, %v58, %v50
    %v75 = vsel %vm67, %v59, %v51
    %v76 = vmax.f32 %v68, 0.0
    %v77 = vmax.f32 %v69, 0.0
    %v78 = vmax.f32 %v70, 0.0
    %v79 = vmax.f32 %v71, 0.0
    %v80 = vmax.f32 %v72, 0.0
    %v81 = vmax.f32 %v73, 0.0
    %v82 = vmax.f32 %v74, 0.0
    %v83 = vmax.f32 %v75, 0.0
    %84 = vst [vmem:[#allocation7] sm:$0xff] %v76
    %85 = vst [vmem:[#allocation7 + $0x8] sm:$0xff] %v77
    %86 = vst [vmem:[#allocation7 + $0x10] sm:$0xff] %v78
    %87 = vst [vmem:[#allocation7 + $0x18] sm:$0xff] %v79
    %88 = vst [vmem:[#allocation7 + $0x20] sm:$0xff] %v80
    %89 = vst [vmem:[#allocation7 + $0x28] sm:$0xff] %v81
    %90 = vst [vmem:[#allocation7 + $0x30] sm:$0xff] %v82
    %91 = vst [vmem:[#allocation7 + $0x38] sm:$0xff] %v83
    // Predicated region
    $region18: #{tpu_custom_call.1} parent=1 // pred_check
      _
    $region19: #{tpu_custom_call.1} parent=1 // pred_check_branch
      %93 = sbr.rel (0) target = $region21
    $region20: #{tpu_custom_call.1} parent=1 // pred_region
      %95 = vsyncadd [#allocation4], 0
      %s96 = sshll.u32 [#allocation7], 4
      %s97 = int_to_ptr.vmem [resolvable:$true] %s96
      %s98 = sshll.u32 %s2, 4
      %s99 = int_to_ptr.hbm [resolvable:$true] %s98
      %104 = dma.vmem_to_hbm [thread:$0]  %s97, 1024, %s99, [#allocation4], 512, 512, 32
    $region21: #{tpu_custom_call.1} parent=1 // pred_fallthru
      _
    // Predicated region
    $region22: #{tpu_custom_call.1} parent=1 // pred_check
      _
    $region23: #{tpu_custom_call.1} parent=1 // pred_check_branch
      %106 = sbr.rel (0) target = $region25
    $region24: #{tpu_custom_call.1} parent=1 // pred_region
      %108 = dma.done [#allocation4], 1024
    $region25: #{tpu_custom_call.1} parent=1 // pred_fallthru
      _
    %109 = vsyncpa [#allocation3], 1
    %110 = vsyncpa [#allocation6], 1
    %111 = vsyncpa [#allocation4], 1

</llo_original>
